<compile_context>
chip_gen: v7x
topology: tpu7x:2x2x1
jax: 0.10.0
libtpu: 0.0.40
codegen_flags: <defaults>
</compile_context>

<pallas_src>
import functools

import jax
import jax.numpy as jnp
from jax.experimental import pallas as pl
from jax.experimental.pallas import tpu as pltpu


# ----------------------------- kernels --------------------------------------

def _hidden_kernel(x_ref, w1_ref, scale1_ref, shift1_ref, h_ref):
    # add_block: Linear(D_in -> H) -> BatchNorm1d (running stats folded into
    # scale1/shift1, applied in f32) -> LeakyReLU(0.1).
    h = jnp.dot(x_ref[...], w1_ref[...], preferred_element_type=jnp.float32)
    h = h * scale1_ref[...] + shift1_ref[...]
    h = jnp.maximum(h, 0.1 * h)          # LeakyReLU, slope in (0,1): one VALU max
    # Dropout(p=0.1): identity in eval mode.
    h_ref[...] = h.astype(h_ref.dtype)


def _classifier_kernel(h_ref, w2_ref, b2_ref, o_ref):
    # classifier: Linear(H -> C), one lane-dense TC tile of W2/b2/out per step.
    out = jnp.dot(h_ref[...], w2_ref[...], preferred_element_type=jnp.float32)
    o_ref[...] = (out + b2_ref[...]).astype(o_ref.dtype)


# ----------------------------- param prep -----------------------------------

def _round_up(x, m):
    return ((x + m - 1) // m) * m


def _choose_c_tiling(class_num):
    """Lane-dense classifier tiling; 256-multiples fill the 2x256 v6e/v7x MXU."""
    c_pad = _round_up(class_num, 256)
    if c_pad <= 512:
        # Small head: single full-width block, no grid/per-step overhead.
        return c_pad, c_pad
    tile_c = 512
    return _round_up(c_pad, tile_c), tile_c


def prepare_params(params):
    """One-time prep: fold BN (eval mode) into scale/shift, pad C, cast weights."""
    eps = 1e-5
    scale = params["bn_gamma"] / jnp.sqrt(params["bn_var"] + eps)        # [1, H]
    shift = params["bn_beta"] - params["bn_mean"] * scale                # [1, H]

    # BN(x @ w1 + b1) == (x @ w1) * scale + (b1 * scale + shift)  (eval mode).
    # Keep w1 an unscaled bf16 copy; apply the f32 scale/shift post-matmul.
    scale1 = scale.astype(jnp.float32)                                   # [1, H]
    shift1 = (params["b1"] * scale + shift).astype(jnp.float32)          # [1, H]

    w2, b2 = params["w2"], params["b2"]
    _, C = w2.shape
    c_pad, tile_c = _choose_c_tiling(C)
    if c_pad != C:
        w2 = jnp.pad(w2, ((0, 0), (0, c_pad - C)))
        b2 = jnp.pad(b2, ((0, 0), (0, c_pad - C)))

    arrays = dict(
        w1=params["w1"].astype(jnp.bfloat16),
        scale1=scale1,
        shift1=shift1,
        w2=w2.astype(jnp.bfloat16),
        b2=b2.astype(jnp.float32),
    )
    meta = dict(class_num=int(C), tile_c=int(tile_c))
    return arrays, meta


# ----------------------------- forward --------------------------------------

@functools.partial(jax.jit, static_argnames=("class_num", "tile_c"))
def _class_block_impl(x, w1, scale1, shift1, w2, b2, *, class_num, tile_c):
    B, D_in = x.shape
    H = w1.shape[1]
    C_pad = w2.shape[1]
    n_steps = C_pad // tile_c

    # Pre-cast activations to bf16 (MXU-native, halves the x DMA).
    x_bf16 = x.astype(jnp.bfloat16)

    # ---- Stage 1: h = LeakyReLU(BN(x @ W1 + b1)), computed exactly once ----
    hidden_cost = pl.CostEstimate(
        flops=2 * B * D_in * H,
        transcendentals=0,
        bytes_accessed=B * D_in * 2 + D_in * H * 2 + 2 * H * 4 + B * H * 2)
    h = pl.pallas_call(
        _hidden_kernel,
        out_shape=jax.ShapeDtypeStruct((B, H), jnp.bfloat16),
        grid_spec=pltpu.PrefetchScalarGridSpec(
            num_scalar_prefetch=0,
            grid=(1,),
            in_specs=[
                pl.BlockSpec((B, D_in), lambda i: (0, 0)),   # x
                pl.BlockSpec((D_in, H), lambda i: (0, 0)),   # w1
                pl.BlockSpec((1, H),    lambda i: (0, 0)),   # BN scale (f32)
                pl.BlockSpec((1, H),    lambda i: (0, 0)),   # folded shift (f32)
            ],
            out_specs=pl.BlockSpec((B, H), lambda i: (0, 0)),
        ),
        compiler_params=pltpu.CompilerParams(
            dimension_semantics=("arbitrary",)),
        cost_estimate=hidden_cost,
    )(x_bf16, w1, scale1, shift1)

    # ---- Stage 2: classifier GEMM, W2 streamed in lane-dense TC tiles ------
    w2_spec_kwargs = {}
    if n_steps >= 3:
        # Per-step MXU work is tiny at small B; deeper prefetch keeps the
        # weight stream ahead of the MXU.
        w2_spec_kwargs["pipeline_mode"] = pl.Buffered(3)

    classifier_cost = pl.CostEstimate(
        flops=2 * B * H * C_pad,
        transcendentals=0,
        bytes_accessed=B * H * 2 + H * C_pad * 2 + C_pad * 4 + B * C_pad * 4)
    out = pl.pallas_call(
        _classifier_kernel,
        out_shape=jax.ShapeDtypeStruct((B, C_pad), jnp.float32),
        grid_spec=pltpu.PrefetchScalarGridSpec(
            num_scalar_prefetch=0,
            grid=(n_steps,),
            in_specs=[
                pl.BlockSpec((B, H), lambda j: (0, 0)),                    # h (resident)
                pl.BlockSpec((H, tile_c), lambda j: (0, j), **w2_spec_kwargs),  # w2 tile
                pl.BlockSpec((1, tile_c), lambda j: (0, j)),               # b2 tile
            ],
            out_specs=pl.BlockSpec((B, tile_c), lambda j: (0, j)),
        ),
        compiler_params=pltpu.CompilerParams(
            dimension_semantics=("parallel",)),
        cost_estimate=classifier_cost,
    )(h, w2, b2)

    return out[:, :class_num]


def class_block_forward(x, arrays, meta):
    """x: [B, D_in] float32. (arrays, meta) from prepare_params."""
    return _class_block_impl(
        x, arrays["w1"], arrays["scale1"], arrays["shift1"],
        arrays["w2"], arrays["b2"],
        class_num=meta["class_num"], tile_c=meta["tile_c"])


# ----------------------------- init (mirrors PyTorch) -----------------------

def init_params(key, input_dim, class_num, num_bottleneck=512):
    """Deterministic init mirroring weights_init_kaiming / weights_init_classifier."""
    k1, k2, k3 = jax.random.split(key, 3)

    # add_block Linear: kaiming_normal, mode='fan_out' -> std = sqrt(2 / fan_out)
    std1 = (2.0 / num_bottleneck) ** 0.5
    w1 = std1 * jax.random.normal(k1, (input_dim, num_bottleneck), jnp.float32)
    b1 = jnp.zeros((1, num_bottleneck), jnp.float32)

    # BatchNorm1d: weight ~ N(1.0, 0.02), bias = 0, running stats (mean=0, var=1)
    bn_gamma = 1.0 + 0.02 * jax.random.normal(k2, (1, num_bottleneck), jnp.float32)
    bn_beta = jnp.zeros((1, num_bottleneck), jnp.float32)
    bn_mean = jnp.zeros((1, num_bottleneck), jnp.float32)
    bn_var = jnp.ones((1, num_bottleneck), jnp.float32)

    # classifier Linear: weight ~ N(0, 0.001), bias = 0
    w2 = 0.001 * jax.random.normal(k3, (num_bottleneck, class_num), jnp.float32)
    b2 = jnp.zeros((1, class_num), jnp.float32)

    return dict(w1=w1, b1=b1, bn_gamma=bn_gamma, bn_beta=bn_beta,
                bn_mean=bn_mean, bn_var=bn_var, w2=w2, b2=b2)


# ----------------------------- demo / self-check ----------------------------

if __name__ == "__main__":
    key = jax.random.PRNGKey(0)
    k_x, k_p1, k_p2 = jax.random.split(key, 3)

    def reference(x, params):
        eps = 1e-5
        scale = params["bn_gamma"] / jnp.sqrt(params["bn_var"] + eps)
        shift = params["bn_beta"] - params["bn_mean"] * scale
        h = x @ params["w1"] + params["b1"]
        h = h * scale + shift
        h = jnp.where(h > 0, h, 0.1 * h)
        return h @ params["w2"] + params["b2"]

    B, D_IN, H = 8, 64, 512
    x = jax.random.normal(k_x, (B, D_IN), jnp.float32)

    # Case 1: small head (C=250) -> single full-width classifier block.
    # Case 2: larger head (C=1500) -> TC=512, 3-step "parallel" C grid
    #         (exercises the tiled, multi-buffered weight-streaming path).
    for k_p, C in ((k_p1, 250), (k_p2, 1500)):
        params = init_params(k_p, input_dim=D_IN, class_num=C, num_bottleneck=H)
        arrays, meta = prepare_params(params)

        out = class_block_forward(x, arrays, meta)
        out = jax.block_until_ready(out)
        assert out.shape == (B, C), out.shape

        ref = reference(x, params)
        # bf16 activations/weights at the MXU inputs => modest tolerance.
        assert jnp.allclose(out, ref, atol=2e-3, rtol=5e-2), (
            C, float(jnp.max(jnp.abs(out - ref))))

    print("KERNEL_OK")
</pallas_src>

<mosaic_0001>
module attributes {stable_mosaic.version = 11 : i64} {
  func.func @_classifier_kernel(%arg0: i32, %arg1: memref<8x512xbf16, #tpu.memory_space<vmem>>, %arg2: memref<512x256xbf16, #tpu.memory_space<vmem>>, %arg3: memref<1x256xf32, #tpu.memory_space<vmem>>, %arg4: memref<8x256xf32, #tpu.memory_space<vmem>>) attributes {dimension_semantics = [#tpu.dimension_semantics<parallel>], iteration_bounds = array<i64: 1>, scalar_prefetch = 0 : i64, scratch_operands = 0 : i64, tpu.core_type = #tpu.core_type<tc>, window_params = [{pipeline_mode = #tpu.pipeline_mode<synchronous>, transform_indices = @transform_0, window_bounds = array<i64: 8, 512>}, {transform_indices = @transform_1, window_bounds = array<i64: 512, 256>}, {transform_indices = @transform_2, window_bounds = array<i64: 1, 256>}, {transform_indices = @transform_3, window_bounds = array<i64: 8, 256>}]} {
    %c0 = arith.constant 0 : index
    %c0_0 = arith.constant 0 : index
    %0 = vector.load %arg1[%c0, %c0_0] : memref<8x512xbf16, #tpu.memory_space<vmem>>, vector<8x512xbf16>
    %c0_1 = arith.constant 0 : index
    %c0_2 = arith.constant 0 : index
    %1 = vector.load %arg2[%c0_1, %c0_2] : memref<512x256xbf16, #tpu.memory_space<vmem>>, vector<512x256xbf16>
    %cst = arith.constant dense<0.000000e+00> : vector<8x256xf32>
    %2 = tpu.matmul %0, %1, %cst {dimension_numbers = #tpu.dot_dimension_numbers<[1], [0], [0], [1], [0, 0, 1, 1], [], []>} : vector<8x512xbf16>, vector<512x256xbf16>, vector<8x256xf32> -> vector<8x256xf32>
    %c0_3 = arith.constant 0 : index
    %c0_4 = arith.constant 0 : index
    %3 = vector.load %arg3[%c0_3, %c0_4] : memref<1x256xf32, #tpu.memory_space<vmem>>, vector<1x256xf32>
    %4 = vector.broadcast %3 : vector<1x256xf32> to vector<8x256xf32>
    %5 = arith.addf %2, %4 : vector<8x256xf32>
    %c0_5 = arith.constant 0 : index
    %c0_6 = arith.constant 0 : index
    %6 = vector.load %arg4[%c0_5, %c0_6] : memref<8x256xf32, #tpu.memory_space<vmem>>, vector<8x256xf32>
    tpu.vector_store %arg4[%c0_5, %c0_6], %5 {strides = array<i32>} : memref<8x256xf32, #tpu.memory_space<vmem>>, vector<8x256xf32>,
    return
  }
  func.func @transform_0(%arg0: i32) -> (i32, i32) {
    %c0_i32 = arith.constant 0 : i32
    %c0_i32_0 = arith.constant 0 : i32
    %c0_i32_1 = arith.constant 0 : i32
    return %c0_i32, %c0_i32_0 : i32, i32
  }
  func.func @transform_1(%arg0: i32) -> (i32, i32) {
    %c0_i32 = arith.constant 0 : i32
    %c0_i32_0 = arith.constant 0 : i32
    return %c0_i32, %arg0 : i32, i32
  }
  func.func @transform_2(%arg0: i32) -> (i32, i32) {
    %c0_i32 = arith.constant 0 : i32
    %c0_i32_0 = arith.constant 0 : i32
    return %c0_i32, %arg0 : i32, i32
  }
  func.func @transform_3(%arg0: i32) -> (i32, i32) {
    %c0_i32 = arith.constant 0 : i32
    %c0_i32_0 = arith.constant 0 : i32
    return %c0_i32, %arg0 : i32, i32
  }
}

module attributes {stable_mosaic.version = 11 : i64} {
  func.func @_hidden_kernel(%arg0: i32, %arg1: memref<8x64xbf16, #tpu.memory_space<vmem>>, %arg2: memref<64x512xbf16, #tpu.memory_space<vmem>>, %arg3: memref<1x512xf32, #tpu.memory_space<vmem>>, %arg4: memref<1x512xf32, #tpu.memory_space<vmem>>, %arg5: memref<8x512xbf16, #tpu.memory_space<vmem>>) attributes {dimension_semantics = [#tpu.dimension_semantics<arbitrary>], iteration_bounds = array<i64: 1>, scalar_prefetch = 0 : i64, scratch_operands = 0 : i64, tpu.core_type = #tpu.core_type<tc>, window_params = [{pipeline_mode = #tpu.pipeline_mode<synchronous>, transform_indices = @transform_0, window_bounds = array<i64: 8, 64>}, {pipeline_mode = #tpu.pipeline_mode<synchronous>, transform_indices = @transform_1, window_bounds = array<i64: 64, 512>}, {pipeline_mode = #tpu.pipeline_mode<synchronous>, transform_indices = @transform_2, window_bounds = array<i64: 1, 512>}, {pipeline_mode = #tpu.pipeline_mode<synchronous>, transform_indices = @transform_3, window_bounds = array<i64: 1, 512>}, {pipeline_mode = #tpu.pipeline_mode<synchronous>, transform_indices = @transform_4, window_bounds = array<i64: 8, 512>}]} {
    %c0 = arith.constant 0 : index
    %c0_0 = arith.constant 0 : index
    %0 = vector.load %arg1[%c0, %c0_0] : memref<8x64xbf16, #tpu.memory_space<vmem>>, vector<8x64xbf16>
    %c0_1 = arith.constant 0 : index
    %c0_2 = arith.constant 0 : index
    %1 = vector.load %arg2[%c0_1, %c0_2] : memref<64x512xbf16, #tpu.memory_space<vmem>>, vector<64x512xbf16>
    %cst = arith.constant dense<0.000000e+00> : vector<8x512xf32>
    %2 = tpu.matmul %0, %1, %cst {dimension_numbers = #tpu.dot_dimension_numbers<[1], [0], [0], [1], [0, 0, 1, 1], [], []>} : vector<8x64xbf16>, vector<64x512xbf16>, vector<8x512xf32> -> vector<8x512xf32>
    %c0_3 = arith.constant 0 : index
    %c0_4 = arith.constant 0 : index
    %3 = vector.load %arg3[%c0_3, %c0_4] : memref<1x512xf32, #tpu.memory_space<vmem>>, vector<1x512xf32>
    %4 = vector.broadcast %3 : vector<1x512xf32> to vector<8x512xf32>
    %5 = arith.mulf %2, %4 : vector<8x512xf32>
    %c0_5 = arith.constant 0 : index
    %c0_6 = arith.constant 0 : index
    %6 = vector.load %arg4[%c0_5, %c0_6] : memref<1x512xf32, #tpu.memory_space<vmem>>, vector<1x512xf32>
    %7 = vector.broadcast %6 : vector<1x512xf32> to vector<8x512xf32>
    %8 = arith.addf %5, %7 : vector<8x512xf32>
    %cst_7 = arith.constant 1.000000e-01 : f32
    %9 = vector.broadcast %cst_7 : f32 to vector<8x512xf32>
    %10 = arith.mulf %9, %8 : vector<8x512xf32>
    %11 = arith.maximumf %8, %10 : vector<8x512xf32>
    %12 = arith.truncf %11 : vector<8x512xf32> to vector<8x512xbf16>
    %c0_8 = arith.constant 0 : index
    %c0_9 = arith.constant 0 : index
    %13 = vector.load %arg5[%c0_8, %c0_9] : memref<8x512xbf16, #tpu.memory_space<vmem>>, vector<8x512xbf16>
    tpu.vector_store %arg5[%c0_8, %c0_9], %12 {strides = array<i32>} : memref<8x512xbf16, #tpu.memory_space<vmem>>, vector<8x512xbf16>,
    return
  }
  func.func @transform_0(%arg0: i32) -> (i32, i32) {
    %c0_i32 = arith.constant 0 : i32
    %c0_i32_0 = arith.constant 0 : i32
    %c0_i32_1 = arith.constant 0 : i32
    return %c0_i32, %c0_i32_0 : i32, i32
  }
  func.func @transform_1(%arg0: i32) -> (i32, i32) {
    %c0_i32 = arith.constant 0 : i32
    %c0_i32_0 = arith.constant 0 : i32
    %c0_i32_1 = arith.constant 0 : i32
    return %c0_i32, %c0_i32_0 : i32, i32
  }
  func.func @transform_2(%arg0: i32) -> (i32, i32) {
    %c0_i32 = arith.constant 0 : i32
    %c0_i32_0 = arith.constant 0 : i32
    %c0_i32_1 = arith.constant 0 : i32
    return %c0_i32, %c0_i32_0 : i32, i32
  }
  func.func @transform_3(%arg0: i32) -> (i32, i32) {
    %c0_i32 = arith.constant 0 : i32
    %c0_i32_0 = arith.constant 0 : i32
    %c0_i32_1 = arith.constant 0 : i32
    return %c0_i32, %c0_i32_0 : i32, i32
  }
  func.func @transform_4(%arg0: i32) -> (i32, i32) {
    %c0_i32 = arith.constant 0 : i32
    %c0_i32_0 = arith.constant 0 : i32
    %c0_i32_1 = arith.constant 0 : i32
    return %c0_i32, %c0_i32_0 : i32, i32
  }
}

</mosaic_0001>

<llo_original>
// kernel: _class_block_impl.2
$region0: #{_class_block_impl.2}
  #allocation0 [shape = 'u32[]', space=smem, size = 0x4, offset = 0x4, fixed_abs, tag = 'smem constant byte address 0x4 - core index']
  #allocation1 [shape = 'u32[144,128]{1,0:T(1,128)}', space=vmem, size = 0x12000, scoped, tag = 'internal scratch']
  %s0 = inlined_call_operand.vmem [shape: bf16[8,64], index: 0, kind: input, shape index: {}]
  %s1 = inlined_call_operand.hbm [shape: bf16[64,512], index: 1, kind: input, shape index: {}]
  %s2 = inlined_call_operand.vmem [shape: f32[1,512], index: 2, kind: input, shape index: {}]
  %s3 = inlined_call_operand.vmem [shape: f32[1,512], index: 3, kind: input, shape index: {}]
  %s4 = inlined_call_operand.vmem [shape: bf16[8,512], index: 4, kind: output, shape index: {}]
  %s5 = sld [smem:[#allocation0]]
  $region30: #{_class_block_impl.2} parent=0
    _
  %s7 = ssub.s32 1, %s5
  %s8 = scalar_select 0, %s7, %s5
  $region1: #{_class_block_impl.2} parent=0
    #allocation2 [shape = 'u8[65536]{0}', space=vmem, size = 0x10000, scoped, tag = 'input window, operand 1, single buffered']
    #allocation3 [shape = 's32[1]{0}', space=sflag, size = 0x4, scoped, tag = 'scoped memory for _class_block_impl.2']
    %9 = vsyncpa [#allocation3], 0
    // Predicated region
    $region2: #{_class_block_impl.2} parent=1 // pred_check
      _
    $region3: #{_class_block_impl.2} parent=1 // pred_check_branch
      %11 = sbr.rel (0) target = $region5
    $region4: #{_class_block_impl.2} parent=1 // pred_region
      _
    $region5: #{_class_block_impl.2} parent=1 // pred_fallthru
      _
    // Predicated region
    $region6: #{_class_block_impl.2} parent=1 // pred_check
      _
    $region7: #{_class_block_impl.2} parent=1 // pred_check_branch
      %13 = sbr.rel (0) target = $region9
    $region8: #{_class_block_impl.2} parent=1 // pred_region
      %s15 = ssub.s32 2048, 2048
      %16 = vsyncadd [#allocation3], %s15
      %s17 = sshll.u32 [#allocation2], 4
      %s18 = int_to_ptr.vmem [resolvable:$true] %s17
      %23 = dma.hbm_to_vmem [thread:$0]  %s1, 2048, %s18, [#allocation3], 256, 256, 16
    $region9: #{_class_block_impl.2} parent=1 // pred_fallthru
      _
    // Predicated region
    $region10: #{_class_block_impl.2} parent=1 // pred_check
      _
    $region11: #{_class_block_impl.2} parent=1 // pred_check_branch
      %25 = sbr.rel (0) target = $region13
    $region12: #{_class_block_impl.2} parent=1 // pred_region
      _
    $region13: #{_class_block_impl.2} parent=1 // pred_fallthru
      _
    // Predicated region
    $region14: #{_class_block_impl.2} parent=1 // pred_check
      _
    $region15: #{_class_block_impl.2} parent=1 // pred_check_branch
      %27 = sbr.rel (0) target = $region17
    $region16: #{_class_block_impl.2} parent=1 // pred_region
      _
    $region17: #{_class_block_impl.2} parent=1 // pred_fallthru
      _
    // Predicated region
    $region18: #{_class_block_impl.2} parent=1 // pred_check
      _
    $region19: #{_class_block_impl.2} parent=1 // pred_check_branch
      %29 = sbr.rel (0) target = $region21
    $region20: #{_class_block_impl.2} parent=1 // pred_region
      %30 = dma.done [#allocation3], 2048
    $region21: #{_class_block_impl.2} parent=1 // pred_fallthru
      _
    %v32 = vld [vmem:[%s0] sm:$0xf]
    %v33 = vld [vmem:[#allocation2] sm:$0xff]
    %v34 = vld [vmem:[#allocation2 + $0x8] sm:$0xff]
    %v35 = vld [vmem:[#allocation2 + $0x10] sm:$0xff]
    %v36 = vld [vmem:[#allocation2 + $0x18] sm:$0xff]
    %v37 = vld [vmem:[#allocation2 + $0x20] sm:$0xff]
    %v38 = vld [vmem:[#allocation2 + $0x28] sm:$0xff]
    %v39 = vld [vmem:[#allocation2 + $0x30] sm:$0xff]
    %v40 = vld [vmem:[#allocation2 + $0x38] sm:$0xff]
    %v41 = vld [vmem:[#allocation2 + $0x40] sm:$0xff]
    %v42 = vld [vmem:[#allocation2 + $0x48] sm:$0xff]
    %v43 = vld [vmem:[#allocation2 + $0x50] sm:$0xff]
    %v44 = vld [vmem:[#allocation2 + $0x58] sm:$0xff]
    %v45 = vld [vmem:[#allocation2 + $0x60] sm:$0xff]
    %v46 = vld [vmem:[#allocation2 + $0x68] sm:$0xff]
    %v47 = vld [vmem:[#allocation2 + $0x70] sm:$0xff]
    %v48 = vld [vmem:[#allocation2 + $0x78] sm:$0xff]
    %v65 = vunpack.c.l.b16 %v33
    %v66 = vunpack.c.h.b16 %v33
    %v67 = vunpack.c.l.b16 %v34
    %v68 = vunpack.c.h.b16 %v34
    %v69 = vunpack.c.l.b16 %v35
    %v70 = vunpack.c.h.b16 %v35
    %v71 = vunpack.c.l.b16 %v36
    %v72 = vunpack.c.h.b16 %v36
    %v73 = vunpack.c.l.b16 %v37
    %v74 = vunpack.c.h.b16 %v37
    %v75 = vunpack.c.l.b16 %v38
    %v76 = vunpack.c.h.b16 %v38
    %v77 = vunpack.c.l.b16 %v39
    %v78 = vunpack.c.h.b16 %v39
    %v79 = vunpack.c.l.b16 %v40
    %v80 = vunpack.c.h.b16 %v40
    %v81 = vunpack.c.l.b16 %v41
    %v82 = vunpack.c.h.b16 %v41
    %v83 = vunpack.c.l.b16 %v42
    %v84 = vunpack.c.h.b16 %v42
    %v85 = vunpack.c.l.b16 %v43
    %v86 = vunpack.c.h.b16 %v43
    %v87 = vunpack.c.l.b16 %v44
    %v88 = vunpack.c.h.b16 %v44
    %v89 = vunpack.c.l.b16 %v45
    %v90 = vunpack.c.h.b16 %v45
    %v91 = vunpack.c.l.b16 %v46
    %v92 = vunpack.c.h.b16 %v46
    %v93 = vunpack.c.l.b16 %v47
    %v94 = vunpack.c.h.b16 %v47
    %v95 = vunpack.c.l.b16 %v48
    %v96 = vunpack.c.h.b16 %v48
    %v97 = vpack.c.b16 %v69, %v65
    %v98 = vpack.c.b16 %v70, %v66
    %v99 = vpack.c.b16 %v71, %v67
    %v100 = vpack.c.b16 %v72, %v68
    %v101 = vpack.c.b16 %v77, %v73
    %v102 = vpack.c.b16 %v78, %v74
    %v103 = vpack.c.b16 %v79, %v75
    %v104 = vpack.c.b16 %v80, %v76
    %v105 = vpack.c.b16 %v85, %v81
    %v106 = vpack.c.b16 %v86, %v82
    %v107 = vpack.c.b16 %v87, %v83
    %v108 = vpack.c.b16 %v88, %v84
    %v109 = vpack.c.b16 %v93, %v89
    %v110 = vpack.c.b16 %v94, %v90
    %v111 = vpack.c.b16 %v95, %v91
    %v112 = vpack.c.b16 %v96, %v92
    %vm129 = vcmask 523264
    %v131 = vsel %vm129, %v32, 0
    %133 = vmatprep.subr.bf16.mxu0 %v98
    %134 = vmatpush1.bf16.msra.mxu0 %v97
    %135 = vmatprep.subr.bf16.mxu0 %v102
    %136 = vmatpush1.bf16.msra.mxu0 %v101
    %137 = vmatprep.subr.bf16.mxu0 %v106
    %138 = vmatpush1.bf16.msra.mxu0 %v105
    %139 = vmatprep.subr.bf16.mxu0 %v110
    %140 = vmatpush1.bf16.msra.mxu0 %v109
    %141 = vmatprep.subr.bf16.mxu0 0
    %142 = vmatpush1.bf16.msra.mxu0 0
    %143 = vmatprep.subr.bf16.mxu0 0
    %144 = vmatpush1.bf16.msra.mxu0 0
    %145 = vmatprep.subr.bf16.mxu0 0
    %146 = vmatpush1.bf16.msra.mxu0 0
    %147 = vmatprep.subr.bf16.mxu0 0
    %148 = vmatpush1.bf16.msra.mxu0 0
    %149 = vmatprep.subr.bf16.mxu0 0
    %150 = vmatpush1.bf16.msra.mxu0 0
    %151 = vmatprep.subr.bf16.mxu0 0
    %152 = vmatpush1.bf16.msra.mxu0 0
    %153 = vmatprep.subr.bf16.mxu0 0
    %154 = vmatpush1.bf16.msra.mxu0 0
    %155 = vmatprep.subr.bf16.mxu0 0
    %156 = vmatpush1.bf16.msra.mxu0 0
    %157 = vmatprep.subr.bf16.mxu0 0
    %158 = vmatpush1.bf16.msra.mxu0 0
    %159 = vmatprep.subr.bf16.mxu0 0
    %160 = vmatpush1.bf16.msra.mxu0 0
    %161 = vmatprep.subr.bf16.mxu0 0
    %162 = vmatpush1.bf16.msra.mxu0 0
    %163 = vmatprep.subr.bf16.mxu0 0
    %164 = vmatpush1.bf16.msra.mxu0 0
    %165 = vmatprep.mubr.bf16.mxu0 0
    %166 = vmatmul.mubr.bf16.gmra.mrb[0].mxu0 %v131
    %v167 = vpop.f32.mrb[0].mxu0
    %v168 = vadd.f32 0.0, %v167
    %v169 = vpop.f32.mrb[0].mxu0
    %v170 = vadd.f32 0.0, %v169
    %v171 = vpop.f32.mrb[0].mxu0
    %v172 = vpop.f32.mrb[0].mxu0
    %173 = vdwg.mxu0
    %174 = vmatprep.subr.bf16.mxu0 %v100
    %175 = vmatpush1.bf16.msra.mxu0 %v99
    %176 = vmatprep.subr.bf16.mxu0 %v104
    %177 = vmatpush1.bf16.msra.mxu0 %v103
    %178 = vmatprep.subr.bf16.mxu0 %v108
    %179 = vmatpush1.bf16.msra.mxu0 %v107
    %180 = vmatprep.subr.bf16.mxu0 %v112
    %181 = vmatpush1.bf16.msra.mxu0 %v111
    %182 = vmatprep.subr.bf16.mxu0 0
    %183 = vmatpush1.bf16.msra.mxu0 0
    %184 = vmatprep.subr.bf16.mxu0 0
    %185 = vmatpush1.bf16.msra.mxu0 0
    %186 = vmatprep.subr.bf16.mxu0 0
    %187 = vmatpush1.bf16.msra.mxu0 0
    %188 = vmatprep.subr.bf16.mxu0 0
    %189 = vmatpush1.bf16.msra.mxu0 0
    %190 = vmatprep.subr.bf16.mxu0 0
    %191 = vmatpush1.bf16.msra.mxu0 0
    %192 = vmatprep.subr.bf16.mxu0 0
    %193 = vmatpush1.bf16.msra.mxu0 0
    %194 = vmatprep.subr.bf16.mxu0 0
    %195 = vmatpush1.bf16.msra.mxu0 0
    %196 = vmatprep.subr.bf16.mxu0 0
    %197 = vmatpush1.bf16.msra.mxu0 0
    %198 = vmatprep.subr.bf16.mxu0 0
    %199 = vmatpush1.bf16.msra.mxu0 0
    %200 = vmatprep.subr.bf16.mxu0 0
    %201 = vmatpush1.bf16.msra.mxu0 0
    %202 = vmatprep.subr.bf16.mxu0 0
    %203 = vmatpush1.bf16.msra.mxu0 0
    %204 = vmatprep.subr.bf16.mxu0 0
    %205 = vmatpush1.bf16.msra.mxu0 0
    %206 = vmatprep.mubr.bf16.mxu0 0
    %207 = vmatmul.mubr.bf16.gmra.mrb[0].mxu0 %v131
    %v208 = vpop.f32.mrb[0].mxu0
    %v209 = vadd.f32 0.0, %v208
    %v210 = vpop.f32.mrb[0].mxu0
    %v211 = vadd.f32 0.0, %v210
    %v212 = vpop.f32.mrb[0].mxu0
    %v213 = vpop.f32.mrb[0].mxu0
    %214 = vdwg.mxu0
    %v215 = vld [vmem:[%s2] sm:$0xf]
    %v217 = vlaneseq
    %v218 = vshrl.u32 %v217, 7
    %v219 = vsub.s32 0, %v218
    %v220 = vrot.slane %v215, %v219
    %v221 = vlaneseq
    %v222 = vshrl.u32 %v221, 7
    %v223 = vsub.s32 1, %v222
    %v224 = vrot.slane %v215, %v223
    %v225 = vlaneseq
    %v226 = vshrl.u32 %v225, 7
    %v227 = vsub.s32 2, %v226
    %v228 = vrot.slane %v215, %v227
    %v229 = vlaneseq
    %v230 = vshrl.u32 %v229, 7
    %v231 = vsub.s32 3, %v230
    %v232 = vrot.slane %v215, %v231
    %v237 = vmul.f32 %v168, %v220
    %v238 = vmul.f32 %v170, %v224
    %v239 = vmul.f32 %v209, %v228
    %v240 = vmul.f32 %v211, %v232
    %v241 = vld [vmem:[%s3] sm:$0xf]
    %v243 = vlaneseq
    %v244 = vshrl.u32 %v243, 7
    %v245 = vsub.s32 0, %v244
    %v246 = vrot.slane %v241, %v245
    %v247 = vlaneseq
    %v248 = vshrl.u32 %v247, 7
    %v249 = vsub.s32 1, %v248
    %v250 = vrot.slane %v241, %v249
    %v251 = vlaneseq
    %v252 = vshrl.u32 %v251, 7
    %v253 = vsub.s32 2, %v252
    %v254 = vrot.slane %v241, %v253
    %v255 = vlaneseq
    %v256 = vshrl.u32 %v255, 7
    %v257 = vsub.s32 3, %v256
    %v258 = vrot.slane %v241, %v257
    %v263 = vadd.f32 %v237, %v246
    %v264 = vadd.f32 %v238, %v250
    %v265 = vadd.f32 %v239, %v254
    %v266 = vadd.f32 %v240, %v258
    %v267 = vmul.f32 %v263, 0.1
    %v268 = vmul.f32 %v264, 0.1
    %v269 = vmul.f32 %v265, 0.1
    %v270 = vmul.f32 %v266, 0.1
    %v271 = vmax.f32 %v263, %v267
    %v272 = vmax.f32 %v264, %v268
    %v273 = vmax.f32 %v265, %v269
    %v274 = vmax.f32 %v266, %v270
    %v275 = vpack.c.bf16 %v271, %v271
    %v276 = vpack.c.bf16 %v272, %v272
    %v277 = vpack.c.bf16 %v273, %v273
    %v278 = vpack.c.bf16 %v274, %v274
    %v283 = vunpack.c.l.b16 %v275
    %v284 = vunpack.c.l.b16 %v276
    %v285 = vunpack.c.l.b16 %v277
    %v286 = vunpack.c.l.b16 %v278
    %v287 = vpack.c.b16 %v284, %v283
    %v288 = vpack.c.b16 %v286, %v285
    %291 = vst [vmem:[%s4] sm:$0xff] %v287
    %292 = vst [vmem:[%s4 + $0x8] sm:$0xff] %v288
    // Predicated region
    $region22: #{_class_block_impl.2} parent=1 // pred_check
      _
    $region23: #{_class_block_impl.2} parent=1 // pred_check_branch
      %294 = sbr.rel (0) target = $region25
    $region24: #{_class_block_impl.2} parent=1 // pred_region
      _
    $region25: #{_class_block_impl.2} parent=1 // pred_fallthru
      _
    // Predicated region
    $region26: #{_class_block_impl.2} parent=1 // pred_check
      _
    $region27: #{_class_block_impl.2} parent=1 // pred_check_branch
      %296 = sbr.rel (0) target = $region29
    $region28: #{_class_block_impl.2} parent=1 // pred_region
      _
    $region29: #{_class_block_impl.2} parent=1 // pred_fallthru
      _
    %297 = vsyncpa [#allocation3], 1

// kernel: _class_block_impl.3
$region0: #{_class_block_impl.3}
  #allocation0 [shape = 'u32[]', space=smem, size = 0x4, offset = 0x4, fixed_abs, tag = 'smem constant byte address 0x4 - core index']
  #allocation1 [shape = 'u32[144,128]{1,0:T(1,128)}', space=vmem, size = 0x12000, scoped, tag = 'internal scratch']
  %s0 = inlined_call_operand.vmem [shape: bf16[8,512], index: 0, kind: input, shape index: {}]
  %s1 = inlined_call_operand.hbm [shape: bf16[512,256], index: 1, kind: input, shape index: {}]
  %s2 = inlined_call_operand.vmem [shape: f32[1,256], index: 2, kind: input, shape index: {}]
  %s3 = inlined_call_operand.hbm [shape: f32[8,256], index: 3, kind: output, shape index: {}]
  %s4 = sld [smem:[#allocation0]]
  $region26: #{_class_block_impl.3} parent=0
    _
  %s6 = ssub.s32 1, %s4
  %s7 = scalar_select 0, %s6, %s4
  $region1: #{_class_block_impl.3} parent=0
    #allocation2 [shape = 'u8[262144]{0}', space=vmem, size = 0x40000, scoped, tag = 'input window, operand 1, single buffered']
    #allocation3 [shape = 's32[1]{0}', space=sflag, size = 0x4, scoped, tag = 'scoped memory for _class_block_impl.3']
    #allocation4 [shape = 's32[1]{0}', space=sflag, size = 0x4, scoped, tag = 'scoped memory for _class_block_impl.3']
    #allocation5 [shape = 'u8[8192]{0}', space=vmem, size = 0x2000, scoped, tag = 'output window, operand 0, single buffered']
    %8 = vsyncpa [#allocation3], 0
    %9 = vsyncpa [#allocation4], 0
    // Predicated region
    $region2: #{_class_block_impl.3} parent=1 // pred_check
      _
    $region3: #{_class_block_impl.3} parent=1 // pred_check_branch
      %11 = sbr.rel (0) target = $region5
    $region4: #{_class_block_impl.3} parent=1 // pred_region
      _
    $region5: #{_class_block_impl.3} parent=1 // pred_fallthru
      _
    // Predicated region
    $region6: #{_class_block_impl.3} parent=1 // pred_check
      _
    $region7: #{_class_block_impl.3} parent=1 // pred_check_branch
      %13 = sbr.rel (0) target = $region9
    $region8: #{_class_block_impl.3} parent=1 // pred_region
      %s15 = ssub.s32 8192, 8192
      %16 = vsyncadd [#allocation3], %s15
      %s17 = sshll.u32 [#allocation2], 4
      %s18 = int_to_ptr.vmem [resolvable:$true] %s17
      %23 = dma.hbm_to_vmem [thread:$0]  %s1, 8192, %s18, [#allocation3], 128, 128, 8
    $region9: #{_class_block_impl.3} parent=1 // pred_fallthru
      _
    // Predicated region
    $region10: #{_class_block_impl.3} parent=1 // pred_check
      _
    $region11: #{_class_block_impl.3} parent=1 // pred_check_branch
      %25 = sbr.rel (0) target = $region13
    $region12: #{_class_block_impl.3} parent=1 // pred_region
      _
    $region13: #{_class_block_impl.3} parent=1 // pred_fallthru
      _
    // Predicated region
    $region14: #{_class_block_impl.3} parent=1 // pred_check
      _
    $region15: #{_class_block_impl.3} parent=1 // pred_check_branch
      %27 = sbr.rel (0) target = $region17
    $region16: #{_class_block_impl.3} parent=1 // pred_region
      %28 = dma.done [#allocation3], 8192
    $region17: #{_class_block_impl.3} parent=1 // pred_fallthru
      _
    %v29 = vld [vmem:[%s0] sm:$0xff]
    %v30 = vld [vmem:[%s0 + $0x8] sm:$0xff]
    %v31 = vld [vmem:[#allocation2] sm:$0xff]
    %v32 = vld [vmem:[#allocation2 + $0x8] sm:$0xff]
    %v33 = vld [vmem:[#allocation2 + $0x10] sm:$0xff]
    %v34 = vld [vmem:[#allocation2 + $0x18] sm:$0xff]
    %v35 = vld [vmem:[#allocation2 + $0x20] sm:$0xff]
    %v36 = vld [vmem:[#allocation2 + $0x28] sm:$0xff]
    %v37 = vld [vmem:[#allocation2 + $0x30] sm:$0xff]
    %v38 = vld [vmem:[#allocation2 + $0x38] sm:$0xff]
    %v39 = vld [vmem:[#allocation2 + $0x40] sm:$0xff]
    %v40 = vld [vmem:[#allocation2 + $0x48] sm:$0xff]
    %v41 = vld [vmem:[#allocation2 + $0x50] sm:$0xff]
    %v42 = vld [vmem:[#allocation2 + $0x58] sm:$0xff]
    %v43 = vld [vmem:[#allocation2 + $0x60] sm:$0xff]
    %v44 = vld [vmem:[#allocation2 + $0x68] sm:$0xff]
    %v45 = vld [vmem:[#allocation2 + $0x70] sm:$0xff]
    %v46 = vld [vmem:[#allocation2 + $0x78] sm:$0xff]
    %v47 = vld [vmem:[#allocation2 + $0x80] sm:$0xff]
    %v48 = vld [vmem:[#allocation2 + $0x88] sm:$0xff]
    %v49 = vld [vmem:[#allocation2 + $0x90] sm:$0xff]
    %v50 = vld [vmem:[#allocation2 + $0x98] sm:$0xff]
    %v51 = vld [vmem:[#allocation2 + $0xa0] sm:$0xff]
    %v52 = vld [vmem:[#allocation2 + $0xa8] sm:$0xff]
    %v53 = vld [vmem:[#allocation2 + $0xb0] sm:$0xff]
    %v54 = vld [vmem:[#allocation2 + $0xb8] sm:$0xff]
    %v55 = vld [vmem:[#allocation2 + $0xc0] sm:$0xff]
    %v56 = vld [vmem:[#allocation2 + $0xc8] sm:$0xff]
    %v57 = vld [vmem:[#allocation2 + $0xd0] sm:$0xff]
    %v58 = vld [vmem:[#allocation2 + $0xd8] sm:$0xff]
    %v59 = vld [vmem:[#allocation2 + $0xe0] sm:$0xff]
    %v60 = vld [vmem:[#allocation2 + $0xe8] sm:$0xff]
    %v61 = vld [vmem:[#allocation2 + $0xf0] sm:$0xff]
    %v62 = vld [vmem:[#allocation2 + $0xf8] sm:$0xff]
    %v63 = vld [vmem:[#allocation2 + $0x100] sm:$0xff]
    %v64 = vld [vmem:[#allocation2 + $0x108] sm:$0xff]
    %v65 = vld [vmem:[#allocation2 + $0x110] sm:$0xff]
    %v66 = vld [vmem:[#allocation2 + $0x118] sm:$0xff]
    %v67 = vld [vmem:[#allocation2 + $0x120] sm:$0xff]
    %v68 = vld [vmem:[#allocation2 + $0x128] sm:$0xff]
    %v69 = vld [vmem:[#allocation2 + $0x130] sm:$0xff]
    %v70 = vld [vmem:[#allocation2 + $0x138] sm:$0xff]
    %v71 = vld [vmem:[#allocation2 + $0x140] sm:$0xff]
    %v72 = vld [vmem:[#allocation2 + $0x148] sm:$0xff]
    %v73 = vld [vmem:[#allocation2 + $0x150] sm:$0xff]
    %v74 = vld [vmem:[#allocation2 + $0x158] sm:$0xff]
    %v75 = vld [vmem:[#allocation2 + $0x160] sm:$0xff]
    %v76 = vld [vmem:[#allocation2 + $0x168] sm:$0xff]
    %v77 = vld [vmem:[#allocation2 + $0x170] sm:$0xff]
    %v78 = vld [vmem:[#allocation2 + $0x178] sm:$0xff]
    %v79 = vld [vmem:[#allocation2 + $0x180] sm:$0xff]
    %v80 = vld [vmem:[#allocation2 + $0x188] sm:$0xff]
    %v81 = vld [vmem:[#allocation2 + $0x190] sm:$0xff]
    %v82 = vld [vmem:[#allocation2 + $0x198] sm:$0xff]
    %v83 = vld [vmem:[#allocation2 + $0x1a0] sm:$0xff]
    %v84 = vld [vmem:[#allocation2 + $0x1a8] sm:$0xff]
    %v85 = vld [vmem:[#allocation2 + $0x1b0] sm:$0xff]
    %v86 = vld [vmem:[#allocation2 + $0x1b8] sm:$0xff]
    %v87 = vld [vmem:[#allocation2 + $0x1c0] sm:$0xff]
    %v88 = vld [vmem:[#allocation2 + $0x1c8] sm:$0xff]
    %v89 = vld [vmem:[#allocation2 + $0x1d0] sm:$0xff]
    %v90 = vld [vmem:[#allocation2 + $0x1d8] sm:$0xff]
    %v91 = vld [vmem:[#allocation2 + $0x1e0] sm:$0xff]
    %v92 = vld [vmem:[#allocation2 + $0x1e8] sm:$0xff]
    %v93 = vld [vmem:[#allocation2 + $0x1f0] sm:$0xff]
    %v94 = vld [vmem:[#allocation2 + $0x1f8] sm:$0xff]
    %v95 = vld [vmem:[%s2] sm:$0x3]
    %v97 = vlaneseq
    %v98 = vshrl.u32 %v97, 7
    %v99 = vsub.s32 0, %v98
    %v100 = vrot.slane %v95, %v99
    %v101 = vlaneseq
    %v102 = vshrl.u32 %v101, 7
    %v103 = vsub.s32 1, %v102
    %v104 = vrot.slane %v95, %v103
    %v109 = vunpack.c.l.b16 %v29
    %v110 = vunpack.c.h.b16 %v29
    %v111 = vunpack.c.l.b16 %v30
    %v112 = vunpack.c.h.b16 %v30
    %v113 = vpack.c.b16 %v109, %v109
    %v114 = vpack.c.b16 %v110, %v110
    %v115 = vpack.c.b16 %v111, %v111
    %v116 = vpack.c.b16 %v112, %v112
    %v185 = vunpack.c.l.b16 %v31
    %v186 = vunpack.c.h.b16 %v31
    %v187 = vunpack.c.l.b16 %v32
    %v188 = vunpack.c.h.b16 %v32
    %v189 = vunpack.c.l.b16 %v33
    %v190 = vunpack.c.h.b16 %v33
    %v191 = vunpack.c.l.b16 %v34
    %v192 = vunpack.c.h.b16 %v34
    %v193 = vunpack.c.l.b16 %v35
    %v194 = vunpack.c.h.b16 %v35
    %v195 = vunpack.c.l.b16 %v36
    %v196 = vunpack.c.h.b16 %v36
    %v197 = vunpack.c.l.b16 %v37
    %v198 = vunpack.c.h.b16 %v37
    %v199 = vunpack.c.l.b16 %v38
    %v200 = vunpack.c.h.b16 %v38
    %v201 = vunpack.c.l.b16 %v39
    %v202 = vunpack.c.h.b16 %v39
    %v203 = vunpack.c.l.b16 %v40
    %v204 = vunpack.c.h.b16 %v40
    %v205 = vunpack.c.l.b16 %v41
    %v206 = vunpack.c.h.b16 %v41
    %v207 = vunpack.c.l.b16 %v42
    %v208 = vunpack.c.h.b16 %v42
    %v209 = vunpack.c.l.b16 %v43
    %v210 = vunpack.c.h.b16 %v43
    %v211 = vunpack.c.l.b16 %v44
    %v212 = vunpack.c.h.b16 %v44
    %v213 = vunpack.c.l.b16 %v45
    %v214 = vunpack.c.h.b16 %v45
    %v215 = vunpack.c.l.b16 %v46
    %v216 = vunpack.c.h.b16 %v46
    %v217 = vunpack.c.l.b16 %v47
    %v218 = vunpack.c.h.b16 %v47
    %v219 = vunpack.c.l.b16 %v48
    %v220 = vunpack.c.h.b16 %v48
    %v221 = vunpack.c.l.b16 %v49
    %v222 = vunpack.c.h.b16 %v49
    %v223 = vunpack.c.l.b16 %v50
    %v224 = vunpack.c.h.b16 %v50
    %v225 = vunpack.c.l.b16 %v51
    %v226 = vunpack.c.h.b16 %v51
    %v227 = vunpack.c.l.b16 %v52
    %v228 = vunpack.c.h.b16 %v52
    %v229 = vunpack.c.l.b16 %v53
    %v230 = vunpack.c.h.b16 %v53
    %v231 = vunpack.c.l.b16 %v54
    %v232 = vunpack.c.h.b16 %v54
    %v233 = vunpack.c.l.b16 %v55
    %v234 = vunpack.c.h.b16 %v55
    %v235 = vunpack.c.l.b16 %v56
    %v236 = vunpack.c.h.b16 %v56
    %v237 = vunpack.c.l.b16 %v57
    %v238 = vunpack.c.h.b16 %v57
    %v239 = vunpack.c.l.b16 %v58
    %v240 = vunpack.c.h.b16 %v58
    %v241 = vunpack.c.l.b16 %v59
    %v242 = vunpack.c.h.b16 %v59
    %v243 = vunpack.c.l.b16 %v60
    %v244 = vunpack.c.h.b16 %v60
    %v245 = vunpack.c.l.b16 %v61
    %v246 = vunpack.c.h.b16 %v61
    %v247 = vunpack.c.l.b16 %v62
    %v248 = vunpack.c.h.b16 %v62
    %v249 = vunpack.c.l.b16 %v63
    %v250 = vunpack.c.h.b16 %v63
    %v251 = vunpack.c.l.b16 %v64
    %v252 = vunpack.c.h.b16 %v64
    %v253 = vunpack.c.l.b16 %v65
    %v254 = vunpack.c.h.b16 %v65
    %v255 = vunpack.c.l.b16 %v66
    %v256 = vunpack.c.h.b16 %v66
    %v257 = vunpack.c.l.b16 %v67
    %v258 = vunpack.c.h.b16 %v67
    %v259 = vunpack.c.l.b16 %v68
    %v260 = vunpack.c.h.b16 %v68
    %v261 = vunpack.c.l.b16 %v69
    %v262 = vunpack.c.h.b16 %v69
    %v263 = vunpack.c.l.b16 %v70
    %v264 = vunpack.c.h.b16 %v70
    %v265 = vunpack.c.l.b16 %v71
    %v266 = vunpack.c.h.b16 %v71
    %v267 = vunpack.c.l.b16 %v72
    %v268 = vunpack.c.h.b16 %v72
    %v269 = vunpack.c.l.b16 %v73
    %v270 = vunpack.c.h.b16 %v73
    %v271 = vunpack.c.l.b16 %v74
    %v272 = vunpack.c.h.b16 %v74
    %v273 = vunpack.c.l.b16 %v75
    %v274 = vunpack.c.h.b16 %v75
    %v275 = vunpack.c.l.b16 %v76
    %v276 = vunpack.c.h.b16 %v76
    %v277 = vunpack.c.l.b16 %v77
    %v278 = vunpack.c.h.b16 %v77
    %v279 = vunpack.c.l.b16 %v78
    %v280 = vunpack.c.h.b16 %v78
    %v281 = vunpack.c.l.b16 %v79
    %v282 = vunpack.c.h.b16 %v79
    %v283 = vunpack.c.l.b16 %v80
    %v284 = vunpack.c.h.b16 %v80
    %v285 = vunpack.c.l.b16 %v81
    %v286 = vunpack.c.h.b16 %v81
    %v287 = vunpack.c.l.b16 %v82
    %v288 = vunpack.c.h.b16 %v82
    %v289 = vunpack.c.l.b16 %v83
    %v290 = vunpack.c.h.b16 %v83
    %v291 = vunpack.c.l.b16 %v84
    %v292 = vunpack.c.h.b16 %v84
    %v293 = vunpack.c.l.b16 %v85
    %v294 = vunpack.c.h.b16 %v85
    %v295 = vunpack.c.l.b16 %v86
    %v296 = vunpack.c.h.b16 %v86
    %v297 = vunpack.c.l.b16 %v87
    %v298 = vunpack.c.h.b16 %v87
    %v299 = vunpack.c.l.b16 %v88
    %v300 = vunpack.c.h.b16 %v88
    %v301 = vunpack.c.l.b16 %v89
    %v302 = vunpack.c.h.b16 %v89
    %v303 = vunpack.c.l.b16 %v90
    %v304 = vunpack.c.h.b16 %v90
    %v305 = vunpack.c.l.b16 %v91
    %v306 = vunpack.c.h.b16 %v91
    %v307 = vunpack.c.l.b16 %v92
    %v308 = vunpack.c.h.b16 %v92
    %v309 = vunpack.c.l.b16 %v93
    %v310 = vunpack.c.h.b16 %v93
    %v311 = vunpack.c.l.b16 %v94
    %v312 = vunpack.c.h.b16 %v94
    %v313 = vpack.c.b16 %v187, %v185
    %v314 = vpack.c.b16 %v188, %v186
    %v315 = vpack.c.b16 %v191, %v189
    %v316 = vpack.c.b16 %v192, %v190
    %v317 = vpack.c.b16 %v195, %v193
    %v318 = vpack.c.b16 %v196, %v194
    %v319 = vpack.c.b16 %v199, %v197
    %v320 = vpack.c.b16 %v200, %v198
    %v321 = vpack.c.b16 %v203, %v201
    %v322 = vpack.c.b16 %v204, %v202
    %v323 = vpack.c.b16 %v207, %v205
    %v324 = vpack.c.b16 %v208, %v206
    %v325 = vpack.c.b16 %v211, %v209
    %v326 = vpack.c.b16 %v212, %v210
    %v327 = vpack.c.b16 %v215, %v213
    %v328 = vpack.c.b16 %v216, %v214
    %v329 = vpack.c.b16 %v219, %v217
    %v330 = vpack.c.b16 %v220, %v218
    %v331 = vpack.c.b16 %v223, %v221
    %v332 = vpack.c.b16 %v224, %v222
    %v333 = vpack.c.b16 %v227, %v225
    %v334 = vpack.c.b16 %v228, %v226
    %v335 = vpack.c.b16 %v231, %v229
    %v336 = vpack.c.b16 %v232, %v230
    %v337 = vpack.c.b16 %v235, %v233
    %v338 = vpack.c.b16 %v236, %v234
    %v339 = vpack.c.b16 %v239, %v237
    %v340 = vpack.c.b16 %v240, %v238
    %v341 = vpack.c.b16 %v243, %v241
    %v342 = vpack.c.b16 %v244, %v242
    %v343 = vpack.c.b16 %v247, %v245
    %v344 = vpack.c.b16 %v248, %v246
    %v345 = vpack.c.b16 %v251, %v249
    %v346 = vpack.c.b16 %v252, %v250
    %v347 = vpack.c.b16 %v255, %v253
    %v348 = vpack.c.b16 %v256, %v254
    %v349 = vpack.c.b16 %v259, %v257
    %v350 = vpack.c.b16 %v260, %v258
    %v351 = vpack.c.b16 %v263, %v261
    %v352 = vpack.c.b16 %v264, %v262
    %v353 = vpack.c.b16 %v267, %v265
    %v354 = vpack.c.b16 %v268, %v266
    %v355 = vpack.c.b16 %v271, %v269
    %v356 = vpack.c.b16 %v272, %v270
    %v357 = vpack.c.b16 %v275, %v273
    %v358 = vpack.c.b16 %v276, %v274
    %v359 = vpack.c.b16 %v279, %v277
    %v360 = vpack.c.b16 %v280, %v278
    %v361 = vpack.c.b16 %v283, %v281
    %v362 = vpack.c.b16 %v284, %v282
    %v363 = vpack.c.b16 %v287, %v285
    %v364 = vpack.c.b16 %v288, %v286
    %v365 = vpack.c.b16 %v291, %v289
    %v366 = vpack.c.b16 %v292, %v290
    %v367 = vpack.c.b16 %v295, %v293
    %v368 = vpack.c.b16 %v296, %v294
    %v369 = vpack.c.b16 %v299, %v297
    %v370 = vpack.c.b16 %v300, %v298
    %v371 = vpack.c.b16 %v303, %v301
    %v372 = vpack.c.b16 %v304, %v302
    %v373 = vpack.c.b16 %v307, %v305
    %v374 = vpack.c.b16 %v308, %v306
    %v375 = vpack.c.b16 %v311, %v309
    %v376 = vpack.c.b16 %v312, %v310
    %441 = vmatprep.subr.bf16.mxu0 %v314
    %442 = vmatpush1.bf16.msra.mxu0 %v313
    %443 = vmatprep.subr.bf16.mxu0 %v316
    %444 = vmatpush1.bf16.msra.mxu0 %v315
    %445 = vmatprep.subr.bf16.mxu0 %v318
    %446 = vmatpush1.bf16.msra.mxu0 %v317
    %447 = vmatprep.subr.bf16.mxu0 %v320
    %448 = vmatpush1.bf16.msra.mxu0 %v319
    %449 = vmatprep.subr.bf16.mxu0 %v322
    %450 = vmatpush1.bf16.msra.mxu0 %v321
    %451 = vmatprep.subr.bf16.mxu0 %v324
    %452 = vmatpush1.bf16.msra.mxu0 %v323
    %453 = vmatprep.subr.bf16.mxu0 %v326
    %454 = vmatpush1.bf16.msra.mxu0 %v325
    %455 = vmatprep.subr.bf16.mxu0 %v328
    %456 = vmatpush1.bf16.msra.mxu0 %v327
    %457 = vmatprep.subr.bf16.mxu0 %v330
    %458 = vmatpush1.bf16.msra.mxu0 %v329
    %459 = vmatprep.subr.bf16.mxu0 %v332
    %460 = vmatpush1.bf16.msra.mxu0 %v331
    %461 = vmatprep.subr.bf16.mxu0 %v334
    %462 = vmatpush1.bf16.msra.mxu0 %v333
    %463 = vmatprep.subr.bf16.mxu0 %v336
    %464 = vmatpush1.bf16.msra.mxu0 %v335
    %465 = vmatprep.subr.bf16.mxu0 %v338
    %466 = vmatpush1.bf16.msra.mxu0 %v337
    %467 = vmatprep.subr.bf16.mxu0 %v340
    %468 = vmatpush1.bf16.msra.mxu0 %v339
    %469 = vmatprep.subr.bf16.mxu0 %v342
    %470 = vmatpush1.bf16.msra.mxu0 %v341
    %471 = vmatprep.subr.bf16.mxu0 %v344
    %472 = vmatpush1.bf16.msra.mxu0 %v343
    %473 = vmatprep.mubr.bf16.mxu0 %v114
    %474 = vmatmul.mubr.bf16.gmra.mrb[0].mxu0 %v113
    %v475 = vpop.f32.mrb[0].mxu0
    %v476 = vadd.f32 %v100, %v475
    %v477 = vpop.f32.mrb[0].mxu0
    %v478 = vadd.f32 %v104, %v477
    %v479 = vpop.f32.mrb[0].mxu0
    %v480 = vpop.f32.mrb[0].mxu0
    %481 = vdwg.mxu0
    %482 = vmatprep.subr.bf16.mxu0 %v346
    %483 = vmatpush1.bf16.msra.mxu0 %v345
    %484 = vmatprep.subr.bf16.mxu0 %v348
    %485 = vmatpush1.bf16.msra.mxu0 %v347
    %486 = vmatprep.subr.bf16.mxu0 %v350
    %487 = vmatpush1.bf16.msra.mxu0 %v349
    %488 = vmatprep.subr.bf16.mxu0 %v352
    %489 = vmatpush1.bf16.msra.mxu0 %v351
    %490 = vmatprep.subr.bf16.mxu0 %v354
    %491 = vmatpush1.bf16.msra.mxu0 %v353
    %492 = vmatprep.subr.bf16.mxu0 %v356
    %493 = vmatpush1.bf16.msra.mxu0 %v355
    %494 = vmatprep.subr.bf16.mxu0 %v358
    %495 = vmatpush1.bf16.msra.mxu0 %v357
    %496 = vmatprep.subr.bf16.mxu0 %v360
    %497 = vmatpush1.bf16.msra.mxu0 %v359
    %498 = vmatprep.subr.bf16.mxu0 %v362
    %499 = vmatpush1.bf16.msra.mxu0 %v361
    %500 = vmatprep.subr.bf16.mxu0 %v364
    %501 = vmatpush1.bf16.msra.mxu0 %v363
    %502 = vmatprep.subr.bf16.mxu0 %v366
    %503 = vmatpush1.bf16.msra.mxu0 %v365
    %504 = vmatprep.subr.bf16.mxu0 %v368
    %505 = vmatpush1.bf16.msra.mxu0 %v367
    %506 = vmatprep.subr.bf16.mxu0 %v370
    %507 = vmatpush1.bf16.msra.mxu0 %v369
    %508 = vmatprep.subr.bf16.mxu0 %v372
    %509 = vmatpush1.bf16.msra.mxu0 %v371
    %510 = vmatprep.subr.bf16.mxu0 %v374
    %511 = vmatpush1.bf16.msra.mxu0 %v373
    %512 = vmatprep.subr.bf16.mxu0 %v376
    %513 = vmatpush1.bf16.msra.mxu0 %v375
    %514 = vmatprep.mubr.bf16.mxu0 %v116
    %515 = vmatmul.mubr.bf16.gmra.mrb[0].mxu0 %v115
    %v516 = vpop.f32.mrb[0].mxu0
    %v517 = vadd.f32 %v476, %v516
    %v518 = vpop.f32.mrb[0].mxu0
    %v519 = vadd.f32 %v478, %v518
    %v520 = vpop.f32.mrb[0].mxu0
    %v521 = vpop.f32.mrb[0].mxu0
    %522 = vdwg.mxu0
    %523 = vst [vmem:[#allocation5] sm:$0xff] %v517
    %524 = vst [vmem:[#allocation5 + $0x8] sm:$0xff] %v519
    // Predicated region
    $region18: #{_class_block_impl.3} parent=1 // pred_check
      _
    $region19: #{_class_block_impl.3} parent=1 // pred_check_branch
      %526 = sbr.rel (0) target = $region21
    $region20: #{_class_block_impl.3} parent=1 // pred_region
      %s528 = ssub.s32 256, 256
      %529 = vsyncadd [#allocation4], %s528
      %s531 = sshll.u32 [#allocation5], 4
      %s532 = int_to_ptr.vmem [resolvable:$true] %s531
      %534 = dma.vmem_to_hbm [thread:$0]  %s532, 256, %s3, [#allocation4]
    $region21: #{_class_block_impl.3} parent=1 // pred_fallthru
      _
    // Predicated region
    $region22: #{_class_block_impl.3} parent=1 // pred_check
      _
    $region23: #{_class_block_impl.3} parent=1 // pred_check_branch
      %536 = sbr.rel (0) target = $region25
    $region24: #{_class_block_impl.3} parent=1 // pred_region
      %537 = dma.done [#allocation4], 256
    $region25: #{_class_block_impl.3} parent=1 // pred_fallthru
      _
    %538 = vsyncpa [#allocation3], 1
    %539 = vsyncpa [#allocation4], 1

</llo_original>
